<compile_context>
chip_gen: v7x
topology: tpu7x:2x2x1
jax: 0.10.0
libtpu: 0.0.40
codegen_flags: <defaults>
</compile_context>

<pallas_src>
import jax
import jax.numpy as jnp
from jax.experimental import pallas as pl
from jax.experimental.pallas import tpu as pltpu


def scoring_kernel(xt_ref, w1_ref, b1_ref, w2_ref, b2_ref, ot_ref):
    # xt : [att_dim, TM]   (nodes on the lane axis)
    # w1 : [hidden, att_dim]   (torch Linear layout, resident)
    # b1 : [hidden, 1]         (resident)
    # w2 : [1, hidden]         (torch Linear layout, resident)
    # b2 : [1, 1] in SMEM      (scalar)
    # out: [1, TM]             (lane-dense)
    h = jnp.dot(w1_ref[...], xt_ref[...],
                preferred_element_type=jnp.float32)          # [hidden, TM] (MXU)
    h = h + b1_ref[...]                                      # lane-broadcast bias
    h = jnp.where(h >= 0.0, h, 0.2 * h)                      # LeakyReLU(0.2) (VPU)
    s = jnp.dot(w2_ref[...], h,
                preferred_element_type=jnp.float32)          # [1, TM]
    ot_ref[...] = (s + b2_ref[0, 0]).astype(ot_ref.dtype)


def scoring_network(x, w1, b1, w2, b2, *, tm=512):
    """x: [N, att_dim]; w1: [hidden, att_dim]; b1: [hidden];
       w2: [1, hidden]; b2: [1]  ->  [N, 1] (float32)."""
    N, att_dim = x.shape
    hidden = w1.shape[0]

    # Tile size on the node/lane axis: multiple of 128, no bigger than needed.
    tm = max(128, min(tm, pl.cdiv(N, 128) * 128))
    n_pad = pl.cdiv(N, tm) * tm
    grid = (n_pad // tm,)

    # Layout plumbing in XLA: transpose so nodes are lane-major, zero-pad to tile.
    xt = jnp.zeros((att_dim, n_pad), jnp.float32).at[:, :N].set(
        x.astype(jnp.float32).T)
    b1c = b1.reshape(hidden, 1).astype(jnp.float32)
    b2s = b2.reshape(1, 1).astype(jnp.float32)

    flops = 2 * n_pad * (att_dim * hidden + hidden)
    bytes_accessed = 4 * (n_pad * att_dim + n_pad          # x in, scores out
                          + hidden * att_dim + hidden      # W1, b1
                          + hidden + 1)                    # W2, b2

    out_t = pl.pallas_call(
        scoring_kernel,
        out_shape=jax.ShapeDtypeStruct((1, n_pad), jnp.float32),
        grid_spec=pltpu.PrefetchScalarGridSpec(
            num_scalar_prefetch=0,
            grid=grid,
            in_specs=[
                pl.BlockSpec((att_dim, tm), lambda i: (0, i)),       # x^T tile
                pl.BlockSpec((hidden, att_dim), lambda i: (0, 0)),   # W1 resident
                pl.BlockSpec((hidden, 1), lambda i: (0, 0)),         # b1 resident
                pl.BlockSpec((1, hidden), lambda i: (0, 0)),         # W2 resident
                pl.BlockSpec(memory_space=pltpu.MemorySpace.SMEM),   # b2 scalar
            ],
            out_specs=pl.BlockSpec((1, tm), lambda i: (0, i)),       # lane-dense
        ),
        compiler_params=pltpu.CompilerParams(
            dimension_semantics=("parallel",),       # v7x: shard N over both TCs
            vmem_limit_bytes=32 * 1024 * 1024,
        ),
        cost_estimate=pl.CostEstimate(
            flops=flops, transcendentals=0, bytes_accessed=bytes_accessed),
    )(xt, w1.astype(jnp.float32), b1c, w2.astype(jnp.float32), b2s)

    return out_t[0, :N].reshape(N, 1)


def scoring_network_forward(inp, w1, b1, w2, b2, att_dim):
    """Mirrors ScoringNetwork.forward, including the `input == 'eye'` branch."""
    if isinstance(inp, str) and inp == "eye":
        inp = jnp.eye(att_dim, dtype=jnp.float32)
    return scoring_network(inp, w1, b1, w2, b2)


def xavier_uniform(key, fan_in, fan_out, shape):
    # matches torch.nn.init.xavier_uniform_ (gain=1)
    limit = jnp.sqrt(6.0 / (fan_in + fan_out))
    return jax.random.uniform(key, shape, jnp.float32, -limit, limit)


if __name__ == "__main__":
    att_dim = 32
    hidden = int(att_dim * 0.75)   # 24
    N = 8

    key = jax.random.PRNGKey(0)
    k_x, k_w1, k_b1, k_w2, k_b2 = jax.random.split(key, 5)

    # Parameters in PyTorch nn.Linear layout: W is [out, in].
    w1 = xavier_uniform(k_w1, att_dim, hidden, (hidden, att_dim))
    w2 = xavier_uniform(k_w2, hidden, 1, (1, hidden))
    # nn.Linear default bias init: U(-1/sqrt(fan_in), 1/sqrt(fan_in))
    b1 = jax.random.uniform(k_b1, (hidden,), jnp.float32,
                            -1.0 / jnp.sqrt(att_dim), 1.0 / jnp.sqrt(att_dim))
    b2 = jax.random.uniform(k_b2, (1,), jnp.float32,
                            -1.0 / jnp.sqrt(hidden), 1.0 / jnp.sqrt(hidden))

    x = jax.random.normal(k_x, (N, att_dim), jnp.float32)

    out = scoring_network(x, w1, b1, w2, b2)
    out = jax.block_until_ready(out)

    # Reference in plain JAX (torch layout: y = x @ W^T + b).
    h_ref = x @ w1.T + b1
    h_ref = jnp.where(h_ref >= 0, h_ref, 0.2 * h_ref)
    ref = h_ref @ w2.T + b2
    assert out.shape == (N, 1)
    assert jnp.allclose(out, ref, atol=1e-4, rtol=1e-4)

    # 'eye' input path from the PyTorch forward: input = I_{att_dim}
    eye_out = jax.block_until_ready(
        scoring_network_forward("eye", w1, b1, w2, b2, att_dim))
    eye_h = jnp.eye(att_dim, dtype=jnp.float32) @ w1.T + b1
    eye_h = jnp.where(eye_h >= 0, eye_h, 0.2 * eye_h)
    eye_ref = eye_h @ w2.T + b2
    assert eye_out.shape == (att_dim, 1)
    assert jnp.allclose(eye_out, eye_ref, atol=1e-4, rtol=1e-4)

    print("KERNEL_OK")
</pallas_src>

<mosaic_0001>
module attributes {stable_mosaic.version = 11 : i64} {
  func.func @scoring_kernel(%arg0: i32, %arg1: memref<32x128xf32, #tpu.memory_space<vmem>>, %arg2: memref<24x32xf32, #tpu.memory_space<vmem>>, %arg3: memref<24x1xf32, #tpu.memory_space<vmem>>, %arg4: memref<1x24xf32, #tpu.memory_space<vmem>>, %arg5: memref<1x1xf32, #tpu.memory_space<smem>>, %arg6: memref<1x128xf32, #tpu.memory_space<vmem>>) attributes {dimension_semantics = [#tpu.dimension_semantics<parallel>], iteration_bounds = array<i64: 1>, scalar_prefetch = 0 : i64, scratch_operands = 0 : i64, tpu.core_type = #tpu.core_type<tc>, window_params = [{transform_indices = @transform_0, window_bounds = array<i64: 32, 128>}, {pipeline_mode = #tpu.pipeline_mode<synchronous>, transform_indices = @transform_1, window_bounds = array<i64: 24, 32>}, {pipeline_mode = #tpu.pipeline_mode<synchronous>, transform_indices = @transform_2, window_bounds = array<i64: 24, 1>}, {pipeline_mode = #tpu.pipeline_mode<synchronous>, transform_indices = @transform_3, window_bounds = array<i64: 1, 24>}, {transform_indices = @transform_4, window_bounds = array<i64: 1, 1>}, {transform_indices = @transform_5, window_bounds = array<i64: 1, 128>}]} {
    %c0 = arith.constant 0 : index
    %c0_0 = arith.constant 0 : index
    %0 = vector.load %arg2[%c0, %c0_0] : memref<24x32xf32, #tpu.memory_space<vmem>>, vector<24x32xf32>
    %c0_1 = arith.constant 0 : index
    %c0_2 = arith.constant 0 : index
    %1 = vector.load %arg1[%c0_1, %c0_2] : memref<32x128xf32, #tpu.memory_space<vmem>>, vector<32x128xf32>
    %cst = arith.constant dense<0.000000e+00> : vector<24x128xf32>
    %2 = tpu.matmul %0, %1, %cst {dimension_numbers = #tpu.dot_dimension_numbers<[1], [0], [0], [1], [0, 0, 1, 1], [], []>} : vector<24x32xf32>, vector<32x128xf32>, vector<24x128xf32> -> vector<24x128xf32>
    %c0_3 = arith.constant 0 : index
    %c0_4 = arith.constant 0 : index
    %3 = vector.load %arg3[%c0_3, %c0_4] : memref<24x1xf32, #tpu.memory_space<vmem>>, vector<24x1xf32>
    %4 = vector.broadcast %3 : vector<24x1xf32> to vector<24x128xf32>
    %5 = arith.addf %2, %4 : vector<24x128xf32>
    %cst_5 = arith.constant 0.000000e+00 : f32
    %6 = vector.broadcast %cst_5 : f32 to vector<24x128xf32>
    %7 = arith.cmpf oge, %5, %6 : vector<24x128xf32>
    %cst_6 = arith.constant 2.000000e-01 : f32
    %8 = vector.broadcast %cst_6 : f32 to vector<24x128xf32>
    %9 = arith.mulf %8, %5 : vector<24x128xf32>
    %10 = arith.select %7, %5, %9 : vector<24x128xi1>, vector<24x128xf32>
    %c0_7 = arith.constant 0 : index
    %c0_8 = arith.constant 0 : index
    %11 = vector.load %arg4[%c0_7, %c0_8] : memref<1x24xf32, #tpu.memory_space<vmem>>, vector<1x24xf32>
    %cst_9 = arith.constant dense<0.000000e+00> : vector<1x128xf32>
    %12 = tpu.matmul %11, %10, %cst_9 {dimension_numbers = #tpu.dot_dimension_numbers<[1], [0], [0], [1], [0, 0, 1, 1], [], []>} : vector<1x24xf32>, vector<24x128xf32>, vector<1x128xf32> -> vector<1x128xf32>
    %c0_10 = arith.constant 0 : index
    %c0_11 = arith.constant 0 : index
    %13 = memref.load %arg5[%c0_10, %c0_11] : memref<1x1xf32, #tpu.memory_space<smem>>
    %14 = vector.broadcast %13 : f32 to vector<1x128xf32>
    %15 = arith.addf %12, %14 : vector<1x128xf32>
    %c0_12 = arith.constant 0 : index
    %c0_13 = arith.constant 0 : index
    %16 = vector.load %arg6[%c0_12, %c0_13] : memref<1x128xf32, #tpu.memory_space<vmem>>, vector<1x128xf32>
    tpu.vector_store %arg6[%c0_12, %c0_13], %15 {strides = array<i32>} : memref<1x128xf32, #tpu.memory_space<vmem>>, vector<1x128xf32>,
    return
  }
  func.func @transform_0(%arg0: i32) -> (i32, i32) {
    %c0_i32 = arith.constant 0 : i32
    %c0_i32_0 = arith.constant 0 : i32
    return %c0_i32, %arg0 : i32, i32
  }
  func.func @transform_1(%arg0: i32) -> (i32, i32) {
    %c0_i32 = arith.constant 0 : i32
    %c0_i32_0 = arith.constant 0 : i32
    %c0_i32_1 = arith.constant 0 : i32
    return %c0_i32, %c0_i32_0 : i32, i32
  }
  func.func @transform_2(%arg0: i32) -> (i32, i32) {
    %c0_i32 = arith.constant 0 : i32
    %c0_i32_0 = arith.constant 0 : i32
    %c0_i32_1 = arith.constant 0 : i32
    return %c0_i32, %c0_i32_0 : i32, i32
  }
  func.func @transform_3(%arg0: i32) -> (i32, i32) {
    %c0_i32 = arith.constant 0 : i32
    %c0_i32_0 = arith.constant 0 : i32
    %c0_i32_1 = arith.constant 0 : i32
    return %c0_i32, %c0_i32_0 : i32, i32
  }
  func.func @transform_4(%arg0: i32) -> (i32, i32) {
    %c0_i32 = arith.constant 0 : i32
    %c0_i32_0 = arith.constant 0 : i32
    %c0_i32_1 = arith.constant 0 : i32
    return %c0_i32, %c0_i32_0 : i32, i32
  }
  func.func @transform_5(%arg0: i32) -> (i32, i32) {
    %c0_i32 = arith.constant 0 : i32
    %c0_i32_0 = arith.constant 0 : i32
    return %c0_i32, %arg0 : i32, i32
  }
}

</mosaic_0001>

<llo_original>
// kernel: tpu_custom_call.1
$region0: #{tpu_custom_call.1}
  #allocation0 [shape = 'u32[]', space=smem, size = 0x4, offset = 0x4, fixed_abs, tag = 'smem constant byte address 0x4 - core index']
  #allocation1 [shape = 'u32[144,128]{1,0:T(1,128)}', space=vmem, size = 0x12000, scoped, tag = 'internal scratch']
  #allocation2 [shape = 'f32[1,1]{1,0:T(1,128)S(6)}', space=smem, size = 0x200, scoped, tag = 'scoped memory for tpu_custom_call.1']
  %s0 = inlined_call_operand.hbm [shape: f32[32,128], index: 0, kind: input, shape index: {}]
  %s1 = inlined_call_operand.vmem [shape: f32[24,32], index: 1, kind: input, shape index: {}]
  %s2 = inlined_call_operand.vmem [shape: f32[24,1], index: 2, kind: input, shape index: {}]
  %s3 = inlined_call_operand.vmem [shape: f32[1,24], index: 3, kind: input, shape index: {}]
  %s4 = inlined_call_operand.<no memory space> [shape: f32[1,1], index: 4, kind: input, shape index: {}]
  %s5 = inlined_call_operand.hbm [shape: f32[1,128], index: 5, kind: output, shape index: {}]
  %s6 = sld [smem:[#allocation0]]
  $region34: #{tpu_custom_call.1} parent=0
    _
  %s8 = ssub.s32 1, %s6
  %s9 = scalar_select 0, %s8, %s6
  %10 = sst [smem:[#allocation2]] %s4
  $region1: #{tpu_custom_call.1} parent=0
    #allocation3 [shape = 'u8[16384]{0}', space=vmem, size = 0x4000, scoped, tag = 'input window, operand 0, single buffered']
    #allocation4 [shape = 's32[1]{0}', space=sflag, size = 0x4, scoped, tag = 'scoped memory for tpu_custom_call.1']
    #allocation5 [shape = 's32[1]{0}', space=sflag, size = 0x4, scoped, tag = 'scoped memory for tpu_custom_call.1']
    #allocation6 [shape = 'u8[512]{0}', space=vmem, size = 0x400, scoped, tag = 'output window, operand 0, single buffered']
    %11 = vsyncpa [#allocation4], 0
    %12 = vsyncpa [#allocation5], 0
    // Predicated region
    $region2: #{tpu_custom_call.1} parent=1 // pred_check
      _
    $region3: #{tpu_custom_call.1} parent=1 // pred_check_branch
      %14 = sbr.rel (0) target = $region5
    $region4: #{tpu_custom_call.1} parent=1 // pred_region
      %s16 = ssub.s32 512, 512
      %17 = vsyncadd [#allocation4], %s16
      %s18 = sshll.u32 [#allocation3], 4
      %s19 = int_to_ptr.vmem [resolvable:$true] %s18
      %24 = dma.hbm_to_vmem [thread:$0]  %s0, 512, %s19, [#allocation4], 128, 128, 8
    $region5: #{tpu_custom_call.1} parent=1 // pred_fallthru
      _
    // Predicated region
    $region6: #{tpu_custom_call.1} parent=1 // pred_check
      _
    $region7: #{tpu_custom_call.1} parent=1 // pred_check_branch
      %26 = sbr.rel (0) target = $region9
    $region8: #{tpu_custom_call.1} parent=1 // pred_region
      _
    $region9: #{tpu_custom_call.1} parent=1 // pred_fallthru
      _
    // Predicated region
    $region10: #{tpu_custom_call.1} parent=1 // pred_check
      _
    $region11: #{tpu_custom_call.1} parent=1 // pred_check_branch
      %28 = sbr.rel (0) target = $region13
    $region12: #{tpu_custom_call.1} parent=1 // pred_region
      _
    $region13: #{tpu_custom_call.1} parent=1 // pred_fallthru
      _
    // Predicated region
    $region14: #{tpu_custom_call.1} parent=1 // pred_check
      _
    $region15: #{tpu_custom_call.1} parent=1 // pred_check_branch
      %30 = sbr.rel (0) target = $region17
    $region16: #{tpu_custom_call.1} parent=1 // pred_region
      _
    $region17: #{tpu_custom_call.1} parent=1 // pred_fallthru
      _
    // Predicated region
    $region18: #{tpu_custom_call.1} parent=1 // pred_check
      _
    $region19: #{tpu_custom_call.1} parent=1 // pred_check_branch
      %32 = sbr.rel (0) target = $region21
    $region20: #{tpu_custom_call.1} parent=1 // pred_region
      _
    $region21: #{tpu_custom_call.1} parent=1 // pred_fallthru
      _
    // Predicated region
    $region22: #{tpu_custom_call.1} parent=1 // pred_check
      _
    $region23: #{tpu_custom_call.1} parent=1 // pred_check_branch
      %34 = sbr.rel (0) target = $region25
    $region24: #{tpu_custom_call.1} parent=1 // pred_region
      %35 = dma.done [#allocation4], 512
    $region25: #{tpu_custom_call.1} parent=1 // pred_fallthru
      _
    %v36 = vld [vmem:[%s1] sm:$0xff]
    %v37 = vld [vmem:[%s1 + $0x8] sm:$0xff]
    %v38 = vld [vmem:[%s1 + $0x10] sm:$0xff]
    %v39 = vld [vmem:[#allocation3] sm:$0xff]
    %v40 = vld [vmem:[#allocation3 + $0x8] sm:$0xff]
    %v41 = vld [vmem:[#allocation3 + $0x10] sm:$0xff]
    %v42 = vld [vmem:[#allocation3 + $0x18] sm:$0xff]
    %v43 = vld [vmem:[%s2] sm:$0xff]
    %v44 = vld [vmem:[%s2 + $0x8] sm:$0xff]
    %v45 = vld [vmem:[%s2 + $0x10] sm:$0xff]
    %47 = vset.pattern.permute.xlu0 0
    %48 = vperm.xlu0 %47, %v43
    %v49 = vpop.permute.xlu0 %48
    %52 = vset.pattern.permute.xlu0 0
    %53 = vperm.xlu0 %52, %v44
    %v54 = vpop.permute.xlu0 %53
    %57 = vset.pattern.permute.xlu0 0
    %58 = vperm.xlu0 %57, %v45
    %v59 = vpop.permute.xlu0 %58
    %vm61 = vcmask 261120
    %v63 = vsel %vm61, %v36, 0
    %v66 = vsel %vm61, %v37, 0
    %v69 = vsel %vm61, %v38, 0
    %71 = vmatprep.subr.mxu0 0.0
    %72 = vmatpush1.msra.mxu0 %v39
    %73 = vmatprep.subr.mxu0 0.0
    %74 = vmatpush1.msra.mxu0 %v40
    %75 = vmatprep.subr.mxu0 0.0
    %76 = vmatpush1.msra.mxu0 %v41
    %77 = vmatprep.subr.mxu0 0.0
    %78 = vmatpush1.msra.mxu0 %v42
    %79 = vmatprep.subr.mxu0 0.0
    %80 = vmatpush1.msra.mxu0 0.0
    %81 = vmatprep.subr.mxu0 0.0
    %82 = vmatpush1.msra.mxu0 0.0
    %83 = vmatprep.subr.mxu0 0.0
    %84 = vmatpush1.msra.mxu0 0.0
    %85 = vmatprep.subr.mxu0 0.0
    %86 = vmatpush1.msra.mxu0 0.0
    %87 = vmatprep.subr.mxu0 0.0
    %88 = vmatpush1.msra.mxu0 0.0
    %89 = vmatprep.subr.mxu0 0.0
    %90 = vmatpush1.msra.mxu0 0.0
    %91 = vmatprep.subr.mxu0 0.0
    %92 = vmatpush1.msra.mxu0 0.0
    %93 = vmatprep.subr.mxu0 0.0
    %94 = vmatpush1.msra.mxu0 0.0
    %95 = vmatprep.subr.mxu0 0.0
    %96 = vmatpush1.msra.mxu0 0.0
    %97 = vmatprep.subr.mxu0 0.0
    %98 = vmatpush1.msra.mxu0 0.0
    %99 = vmatprep.subr.mxu0 0.0
    %100 = vmatpush1.msra.mxu0 0.0
    %101 = vmatprep.subr.mxu0 0.0
    %102 = vmatpush1.msra.mxu0 0.0
    %103 = vmatprep.subr.mxu0 0.0
    %104 = vmatpush1.msra.mxu0 0.0
    %105 = vmatprep.subr.mxu0 0.0
    %106 = vmatpush1.msra.mxu0 0.0
    %107 = vmatprep.subr.mxu0 0.0
    %108 = vmatpush1.msra.mxu0 0.0
    %109 = vmatprep.subr.mxu0 0.0
    %110 = vmatpush1.msra.mxu0 0.0
    %111 = vmatprep.subr.mxu0 0.0
    %112 = vmatpush1.msra.mxu0 0.0
    %113 = vmatprep.subr.mxu0 0.0
    %114 = vmatpush1.msra.mxu0 0.0
    %115 = vmatprep.subr.mxu0 0.0
    %116 = vmatpush1.msra.mxu0 0.0
    %117 = vmatprep.subr.mxu0 0.0
    %118 = vmatpush1.msra.mxu0 0.0
    %119 = vmatprep.subr.mxu0 0.0
    %120 = vmatpush1.msra.mxu0 0.0
    %121 = vmatprep.subr.mxu0 0.0
    %122 = vmatpush1.msra.mxu0 0.0
    %123 = vmatprep.subr.mxu0 0.0
    %124 = vmatpush1.msra.mxu0 0.0
    %125 = vmatprep.subr.mxu0 0.0
    %126 = vmatpush1.msra.mxu0 0.0
    %127 = vmatprep.subr.mxu0 0.0
    %128 = vmatpush1.msra.mxu0 0.0
    %129 = vmatprep.subr.mxu0 0.0
    %130 = vmatpush1.msra.mxu0 0.0
    %131 = vmatprep.subr.mxu0 0.0
    %132 = vmatpush1.msra.mxu0 0.0
    %133 = vmatprep.subr.mxu0 0.0
    %134 = vmatpush1.msra.mxu0 0.0
    %135 = vmatprep.mubr.f32.mxu0 0.0
    %136 = vmatmul.mubr.f32.gmra.mrb[0].mxu0 %v63
    %v137 = vpop.f32.mrb[0].mxu0
    %v138 = vadd.f32 %v49, %v137
    %v139 = vpop.f32.mrb[0].mxu0
    %140 = vmatprep.mubr.f32.mxu0 0.0
    %141 = vmatmul.mubr.f32.gmra.mrb[0].mxu0 %v66
    %v142 = vpop.f32.mrb[0].mxu0
    %v143 = vadd.f32 %v54, %v142
    %v144 = vpop.f32.mrb[0].mxu0
    %145 = vmatprep.mubr.f32.mxu0 0.0
    %146 = vmatmul.mubr.f32.gmra.mrb[0].mxu0 %v69
    %v147 = vpop.f32.mrb[0].mxu0
    %v148 = vadd.f32 %v59, %v147
    %v149 = vpop.f32.mrb[0].mxu0
    %150 = vdwg.mxu0
    %vm151 = vcmp.ge.f32.partialorder %v138, 0.0
    %vm152 = vcmp.ge.f32.partialorder %v143, 0.0
    %vm153 = vcmp.ge.f32.partialorder %v148, 0.0
    %v154 = vmul.f32 %v138, 0.2
    %v155 = vmul.f32 %v143, 0.2
    %v156 = vmul.f32 %v148, 0.2
    %v157 = vsel %vm151, %v138, %v154
    %v158 = vsel %vm152, %v143, %v155
    %v159 = vsel %vm153, %v148, %v156
    %v160 = vld [vmem:[%s3] sm:$0x1]
    %s161 = sld [smem:[#allocation2]]
    %v162 = vstv %s161
    %vm163 = vcmask 195584
    %v165 = vsel %vm163, %v160, 0
    %167 = vmatprep.subr.mxu0 0.0
    %168 = vmatpush1.msra.mxu0 %v157
    %169 = vmatprep.subr.mxu0 0.0
    %170 = vmatpush1.msra.mxu0 %v158
    %171 = vmatprep.subr.mxu0 0.0
    %172 = vmatpush1.msra.mxu0 %v159
    %173 = vmatprep.subr.mxu0 0.0
    %174 = vmatpush1.msra.mxu0 0.0
    %175 = vmatprep.subr.mxu0 0.0
    %176 = vmatpush1.msra.mxu0 0.0
    %177 = vmatprep.subr.mxu0 0.0
    %178 = vmatpush1.msra.mxu0 0.0
    %179 = vmatprep.subr.mxu0 0.0
    %180 = vmatpush1.msra.mxu0 0.0
    %181 = vmatprep.subr.mxu0 0.0
    %182 = vmatpush1.msra.mxu0 0.0
    %183 = vmatprep.subr.mxu0 0.0
    %184 = vmatpush1.msra.mxu0 0.0
    %185 = vmatprep.subr.mxu0 0.0
    %186 = vmatpush1.msra.mxu0 0.0
    %187 = vmatprep.subr.mxu0 0.0
    %188 = vmatpush1.msra.mxu0 0.0
    %189 = vmatprep.subr.mxu0 0.0
    %190 = vmatpush1.msra.mxu0 0.0
    %191 = vmatprep.subr.mxu0 0.0
    %192 = vmatpush1.msra.mxu0 0.0
    %193 = vmatprep.subr.mxu0 0.0
    %194 = vmatpush1.msra.mxu0 0.0
    %195 = vmatprep.subr.mxu0 0.0
    %196 = vmatpush1.msra.mxu0 0.0
    %197 = vmatprep.subr.mxu0 0.0
    %198 = vmatpush1.msra.mxu0 0.0
    %199 = vmatprep.subr.mxu0 0.0
    %200 = vmatpush1.msra.mxu0 0.0
    %201 = vmatprep.subr.mxu0 0.0
    %202 = vmatpush1.msra.mxu0 0.0
    %203 = vmatprep.subr.mxu0 0.0
    %204 = vmatpush1.msra.mxu0 0.0
    %205 = vmatprep.subr.mxu0 0.0
    %206 = vmatpush1.msra.mxu0 0.0
    %207 = vmatprep.subr.mxu0 0.0
    %208 = vmatpush1.msra.mxu0 0.0
    %209 = vmatprep.subr.mxu0 0.0
    %210 = vmatpush1.msra.mxu0 0.0
    %211 = vmatprep.subr.mxu0 0.0
    %212 = vmatpush1.msra.mxu0 0.0
    %213 = vmatprep.subr.mxu0 0.0
    %214 = vmatpush1.msra.mxu0 0.0
    %215 = vmatprep.subr.mxu0 0.0
    %216 = vmatpush1.msra.mxu0 0.0
    %217 = vmatprep.subr.mxu0 0.0
    %218 = vmatpush1.msra.mxu0 0.0
    %219 = vmatprep.subr.mxu0 0.0
    %220 = vmatpush1.msra.mxu0 0.0
    %221 = vmatprep.subr.mxu0 0.0
    %222 = vmatpush1.msra.mxu0 0.0
    %223 = vmatprep.subr.mxu0 0.0
    %224 = vmatpush1.msra.mxu0 0.0
    %225 = vmatprep.subr.mxu0 0.0
    %226 = vmatpush1.msra.mxu0 0.0
    %227 = vmatprep.subr.mxu0 0.0
    %228 = vmatpush1.msra.mxu0 0.0
    %229 = vmatprep.subr.mxu0 0.0
    %230 = vmatpush1.msra.mxu0 0.0
    %231 = vmatprep.mubr.f32.mxu0 0.0
    %232 = vmatmul.mubr.f32.gmra.mrb[0].mxu0 %v165
    %v233 = vpop.f32.mrb[0].mxu0
    %v234 = vadd.f32 %v162, %v233
    %v235 = vpop.f32.mrb[0].mxu0
    %236 = vdwg.mxu0
    %237 = vst [vmem:[#allocation6] sm:$0x1] %v234
    // Predicated region
    $region26: #{tpu_custom_call.1} parent=1 // pred_check
      _
    $region27: #{tpu_custom_call.1} parent=1 // pred_check_branch
      %239 = sbr.rel (0) target = $region29
    $region28: #{tpu_custom_call.1} parent=1 // pred_region
      %s241 = ssub.s32 16, 16
      %242 = vsyncadd [#allocation5], %s241
      %s244 = sshll.u32 [#allocation6], 4
      %s245 = int_to_ptr.vmem [resolvable:$true] %s244
      %247 = dma.vmem_to_hbm [thread:$0]  %s245, 16, %s5, [#allocation5]
    $region29: #{tpu_custom_call.1} parent=1 // pred_fallthru
      _
    // Predicated region
    $region30: #{tpu_custom_call.1} parent=1 // pred_check
      _
    $region31: #{tpu_custom_call.1} parent=1 // pred_check_branch
      %249 = sbr.rel (0) target = $region33
    $region32: #{tpu_custom_call.1} parent=1 // pred_region
      %250 = dma.done [#allocation5], 16
    $region33: #{tpu_custom_call.1} parent=1 // pred_fallthru
      _
    %251 = vsyncpa [#allocation4], 1
    %252 = vsyncpa [#allocation5], 1

</llo_original>
